<compile_context>
chip_gen: v7x
topology: tpu7x:2x2x1
jax: 0.10.0
libtpu: 0.0.40
codegen_flags: <defaults>
</compile_context>

<pallas_src>
import functools

import jax
import jax.numpy as jnp
from jax.experimental import pallas as pl
from jax.experimental.pallas import tpu as pltpu

LANES = 128


def _round_up_lanes(x):
    return ((x + LANES - 1) // LANES) * LANES


def _pick_tile(n, cap):
    """Largest power-of-two-ish tile <= cap that divides n (fallback: n)."""
    for t in (cap, 512, 256, 128, 64, 32, 16, 8):
        if t <= n and t <= cap and n % t == 0:
            return t
    return n


# ---------------------------------------------------------------------------
# Pallas kernel: one GCN layer, K-tiled aggregation + fused feature transform
#   out_tile = act( (sum_k A[i,k] @ H[k]) @ W + b )
# ---------------------------------------------------------------------------
def _gcn_layer_kernel(a_ref, h_ref, w_ref, b_ref, o_ref, acc_ref, *, apply_relu):
    k = pl.program_id(1)

    @pl.when(k == 0)
    def _():
        acc_ref[...] = jnp.zeros_like(acc_ref)

    # Neighborhood aggregation on the MXU: bf16 inputs, f32 accumulation.
    acc_ref[...] += jnp.dot(a_ref[...], h_ref[...],
                            preferred_element_type=jnp.float32)

    @pl.when(k == pl.num_programs(1) - 1)
    def _():
        # Tiny per-row-tile feature transform (F_h x F_out_pad), bias, act.
        # bf16 operands -> full-rate MXU; accumulate in f32.
        h = jnp.dot(acc_ref[...].astype(w_ref.dtype), w_ref[...],
                    preferred_element_type=jnp.float32)
        h = h + b_ref[...]
        if apply_relu:
            h = jnp.maximum(h, 0.0)
        o_ref[...] = h.astype(o_ref.dtype)


def gcn_layer(a_hat, h, w, b, *, apply_relu, out_dtype=jnp.float32,
              tile_n=128, tile_k=256):
    """One GCNConv layer: act((A_hat @ H) @ W + b), Pallas-tiled over rows & K.

    a_hat : [N, N]      bf16 normalized adjacency
    h     : [N, F_h]    bf16 node features fed to the aggregation matmul
    w     : [F_h, F_o]  bf16 weight, F_o padded to a multiple of 128 (lane-dense)
    b     : [1, F_o]    f32 bias (padded to match w)
    """
    n = a_hat.shape[0]
    f_h = h.shape[1]
    f_out = w.shape[1]
    tile_n = _pick_tile(n, tile_n)
    tile_k = _pick_tile(n, tile_k)
    assert n % tile_n == 0 and n % tile_k == 0, "N must divide the tile sizes"
    assert f_out % LANES == 0, "pad F_out to a multiple of 128 for dense stores"

    kernel = functools.partial(_gcn_layer_kernel, apply_relu=apply_relu)
    return pl.pallas_call(
        kernel,
        out_shape=jax.ShapeDtypeStruct((n, f_out), out_dtype),
        grid_spec=pltpu.PrefetchScalarGridSpec(
            num_scalar_prefetch=0,
            grid=(n // tile_n, n // tile_k),
            in_specs=[
                pl.BlockSpec((tile_n, tile_k), lambda i, k: (i, k)),  # A tile
                pl.BlockSpec((tile_k, f_h), lambda i, k: (k, 0)),     # H k-tile
                pl.BlockSpec((f_h, f_out), lambda i, k: (0, 0)),      # W (resident)
                pl.BlockSpec((1, f_out), lambda i, k: (0, 0)),        # bias
            ],
            out_specs=pl.BlockSpec((tile_n, f_out), lambda i, k: (i, 0)),
            scratch_shapes=[pltpu.VMEM((tile_n, f_h), jnp.float32)],  # f32 acc
        ),
        compiler_params=pltpu.CompilerParams(
            dimension_semantics=("parallel", "arbitrary"),
            vmem_limit_bytes=32 * 1024 * 1024,
        ),
    )(a_hat, h, w, b)


# ---------------------------------------------------------------------------
# Glue: dense symmetric-normalized adjacency from edge_index
# ---------------------------------------------------------------------------
def normalized_adjacency(edge_index, num_nodes):
    src, dst = edge_index[0], edge_index[1]
    adj = jnp.zeros((num_nodes, num_nodes), jnp.float32)
    adj = adj.at[dst, src].set(1.0)                 # messages flow src -> dst
    eye = jnp.eye(num_nodes, dtype=jnp.float32)
    adj = adj * (1.0 - eye) + eye                   # exactly one self loop / node
    deg = adj.sum(axis=1)
    d_inv_sqrt = jnp.where(deg > 0, 1.0 / jnp.sqrt(deg), 0.0)
    return adj * d_inv_sqrt[:, None] * d_inv_sqrt[None, :]


def _pad_2d(arr, rows, cols):
    return jnp.pad(arr, ((0, rows - arr.shape[0]), (0, cols - arr.shape[1])))


# ---------------------------------------------------------------------------
# GraphMAE (forward == encoder forward). Encoder: 2-layer GCN, returns the
# list of per-layer outputs (matching lrgae encoders' convention).
# ---------------------------------------------------------------------------
class GraphMAEPallas:
    def __init__(self, in_channels=32, hidden_channels=64, out_channels=32,
                 replace_rate=0.2, mask_rate=0.5, seed=0):
        self.in_channels = in_channels
        self.hidden_channels = hidden_channels
        self.out_channels = out_channels
        self.replace_rate = replace_rate
        self.mask_token_rate = 1.0 - replace_rate
        self.mask_rate = mask_rate

        self.hid_pad = _round_up_lanes(hidden_channels)
        self.out_pad = _round_up_lanes(out_channels)

        key = jax.random.PRNGKey(seed)
        k1, k2 = jax.random.split(key)
        w1 = jax.random.normal(k1, (in_channels, hidden_channels),
                               jnp.float32) * (1.0 / jnp.sqrt(in_channels))
        w2 = jax.random.normal(k2, (hidden_channels, out_channels),
                               jnp.float32) * (1.0 / jnp.sqrt(hidden_channels))
        # Zero-pad weights/bias to 128-wide output lanes (and pad W2's input
        # rows to match the padded hidden width) -> lane-dense stores, and the
        # zero padding keeps the math exactly equivalent.  Weights live in
        # bf16 so the fused transform also runs at full MXU rate.
        self.w1_pad = _pad_2d(w1, in_channels, self.hid_pad).astype(jnp.bfloat16)
        self.b1_pad = jnp.zeros((1, self.hid_pad), jnp.float32)
        self.w2_pad = _pad_2d(w2, self.hid_pad, self.out_pad).astype(jnp.bfloat16)
        self.b2_pad = jnp.zeros((1, self.out_pad), jnp.float32)

        # nn.Parameter(torch.zeros(1, encoder.in_channels)); unused in forward.
        self.enc_mask_token = jnp.zeros((1, in_channels), jnp.float32)
        # TODO(synk): neck / decoder / SCELoss / masking belong to train_step,
        # not forward(); forward() == encoder(x, edge_index), implemented here.

    def forward(self, x, edge_index):
        n = x.shape[0]
        a_bf = normalized_adjacency(edge_index, n).astype(jnp.bfloat16)
        x_bf = x.astype(jnp.bfloat16)

        # Layer 1: (A @ X) @ W1 + b1, ReLU.  F_in=32 stays narrow in the
        # aggregation; the 128-wide padded transform happens once per row tile.
        # Output is emitted in bf16 since it only feeds layer 2's aggregation.
        h1_pad = gcn_layer(a_bf, x_bf, self.w1_pad, self.b1_pad,
                           apply_relu=True, out_dtype=jnp.bfloat16)
        # Layer 2: feed the padded (zero-extended) hidden features straight in;
        # padded rows of W2 are zero so the math is unchanged.
        h2_pad = gcn_layer(a_bf, h1_pad, self.w2_pad, self.b2_pad,
                           apply_relu=False, out_dtype=jnp.float32)

        return [h1_pad[:, :self.hidden_channels].astype(jnp.float32),
                h2_pad[:, :self.out_channels]]

    __call__ = forward


# ---------------------------------------------------------------------------
if __name__ == "__main__":
    N = 256           # number of nodes (multiple of the 128 tiles)
    F_IN = 32         # encoder.in_channels
    HID = 64
    F_OUT = 32
    NUM_EDGES = 1024

    key = jax.random.PRNGKey(0)
    kx, ke = jax.random.split(key)
    x = jax.random.normal(kx, (N, F_IN), jnp.float32)
    edge_index = jax.random.randint(ke, (2, NUM_EDGES), 0, N, jnp.int32)

    model = GraphMAEPallas(in_channels=F_IN, hidden_channels=HID,
                           out_channels=F_OUT, seed=0)

    outs = model(x, edge_index)
    outs = [jax.block_until_ready(o) for o in outs]

    assert outs[0].shape == (N, HID)
    assert outs[1].shape == (N, F_OUT)
    assert all(jnp.isfinite(o).all() for o in outs)

    # Pure-JAX reference with the same bf16 quantization / associativity.
    a_ref = normalized_adjacency(edge_index, N).astype(jnp.bfloat16).astype(jnp.float32)
    x_ref = x.astype(jnp.bfloat16).astype(jnp.float32)
    w1_ref = model.w1_pad.astype(jnp.float32)
    w2_ref = model.w2_pad.astype(jnp.float32)

    agg1 = (a_ref @ x_ref).astype(jnp.bfloat16).astype(jnp.float32)
    ref1 = jnp.maximum(agg1 @ w1_ref + model.b1_pad, 0.0)
    h1_q = ref1.astype(jnp.bfloat16).astype(jnp.float32)
    agg2 = (a_ref @ h1_q).astype(jnp.bfloat16).astype(jnp.float32)
    ref2 = agg2 @ w2_ref + model.b2_pad

    assert jnp.allclose(outs[0], ref1[:, :HID], atol=3e-2, rtol=3e-2)
    assert jnp.allclose(outs[1], ref2[:, :F_OUT], atol=3e-2, rtol=3e-2)

    print("KERNEL_OK")
</pallas_src>

<mosaic_0001>
module attributes {stable_mosaic.version = 11 : i64} {
  func.func @_gcn_layer_kernel(%arg0: i32, %arg1: i32, %arg2: memref<128x256xbf16, #tpu.memory_space<vmem>>, %arg3: memref<256x32xbf16, #tpu.memory_space<vmem>>, %arg4: memref<32x128xbf16, #tpu.memory_space<vmem>>, %arg5: memref<1x128xf32, #tpu.memory_space<vmem>>, %arg6: memref<128x128xbf16, #tpu.memory_space<vmem>>, %arg7: memref<128x32xf32, #tpu.memory_space<vmem>>) attributes {dimension_semantics = [#tpu.dimension_semantics<parallel>, #tpu.dimension_semantics<arbitrary>], iteration_bounds = array<i64: 2, 1>, scalar_prefetch = 0 : i64, scratch_operands = 1 : i64, tpu.core_type = #tpu.core_type<tc>, window_params = [{transform_indices = @transform_0, window_bounds = array<i64: 128, 256>}, {transform_indices = @transform_1, window_bounds = array<i64: 256, 32>}, {pipeline_mode = #tpu.pipeline_mode<synchronous>, transform_indices = @transform_2, window_bounds = array<i64: 32, 128>}, {pipeline_mode = #tpu.pipeline_mode<synchronous>, transform_indices = @transform_3, window_bounds = array<i64: 1, 128>}, {transform_indices = @transform_4, window_bounds = array<i64: 128, 128>}]} {
    %c0_i32 = arith.constant 0 : i32
    %0 = arith.cmpi eq, %arg1, %c0_i32 : i32
    %1 = arith.extui %0 : i1 to i32
    %c0_i32_0 = arith.constant 0 : i32
    %2 = arith.cmpi ne, %1, %c0_i32_0 : i32
    scf.if %2 {
      %cst_10 = arith.constant 0.000000e+00 : f32
      %12 = vector.broadcast %cst_10 : f32 to vector<128x32xf32>
      %c0_11 = arith.constant 0 : index
      %c0_12 = arith.constant 0 : index
      %13 = vector.load %arg7[%c0_11, %c0_12] : memref<128x32xf32, #tpu.memory_space<vmem>>, vector<128x32xf32>
      tpu.vector_store %arg7[%c0_11, %c0_12], %12 {strides = array<i32>} : memref<128x32xf32, #tpu.memory_space<vmem>>, vector<128x32xf32>,
    } else {
    }
    %c0 = arith.constant 0 : index
    %c0_1 = arith.constant 0 : index
    %3 = vector.load %arg7[%c0, %c0_1] : memref<128x32xf32, #tpu.memory_space<vmem>>, vector<128x32xf32>
    %c0_2 = arith.constant 0 : index
    %c0_3 = arith.constant 0 : index
    %4 = vector.load %arg2[%c0_2, %c0_3] : memref<128x256xbf16, #tpu.memory_space<vmem>>, vector<128x256xbf16>
    %c0_4 = arith.constant 0 : index
    %c0_5 = arith.constant 0 : index
    %5 = vector.load %arg3[%c0_4, %c0_5] : memref<256x32xbf16, #tpu.memory_space<vmem>>, vector<256x32xbf16>
    %cst = arith.constant dense<0.000000e+00> : vector<128x32xf32>
    %6 = tpu.matmul %4, %5, %cst {dimension_numbers = #tpu.dot_dimension_numbers<[1], [0], [0], [1], [0, 0, 1, 1], [], []>} : vector<128x256xbf16>, vector<256x32xbf16>, vector<128x32xf32> -> vector<128x32xf32>
    %7 = arith.addf %3, %6 : vector<128x32xf32>
    %c0_6 = arith.constant 0 : index
    %c0_7 = arith.constant 0 : index
    %8 = vector.load %arg7[%c0_6, %c0_7] : memref<128x32xf32, #tpu.memory_space<vmem>>, vector<128x32xf32>
    tpu.vector_store %arg7[%c0_6, %c0_7], %7 {strides = array<i32>} : memref<128x32xf32, #tpu.memory_space<vmem>>, vector<128x32xf32>,
    %c0_i32_8 = arith.constant 0 : i32
    %9 = arith.cmpi eq, %arg1, %c0_i32_8 : i32
    %10 = arith.extui %9 : i1 to i32
    %c0_i32_9 = arith.constant 0 : i32
    %11 = arith.cmpi ne, %10, %c0_i32_9 : i32
    scf.if %11 {
      %c0_10 = arith.constant 0 : index
      %c0_11 = arith.constant 0 : index
      %12 = vector.load %arg7[%c0_10, %c0_11] : memref<128x32xf32, #tpu.memory_space<vmem>>, vector<128x32xf32>
      %13 = arith.truncf %12 : vector<128x32xf32> to vector<128x32xbf16>
      %c0_12 = arith.constant 0 : index
      %c0_13 = arith.constant 0 : index
      %14 = vector.load %arg4[%c0_12, %c0_13] : memref<32x128xbf16, #tpu.memory_space<vmem>>, vector<32x128xbf16>
      %cst_14 = arith.constant dense<0.000000e+00> : vector<128x128xf32>
      %15 = tpu.matmul %13, %14, %cst_14 {dimension_numbers = #tpu.dot_dimension_numbers<[1], [0], [0], [1], [0, 0, 1, 1], [], []>} : vector<128x32xbf16>, vector<32x128xbf16>, vector<128x128xf32> -> vector<128x128xf32>
      %c0_15 = arith.constant 0 : index
      %c0_16 = arith.constant 0 : index
      %16 = vector.load %arg5[%c0_15, %c0_16] : memref<1x128xf32, #tpu.memory_space<vmem>>, vector<1x128xf32>
      %17 = vector.broadcast %16 : vector<1x128xf32> to vector<128x128xf32>
      %18 = arith.addf %15, %17 : vector<128x128xf32>
      %cst_17 = arith.constant 0.000000e+00 : f32
      %19 = vector.broadcast %cst_17 : f32 to vector<128x128xf32>
      %20 = arith.maximumf %18, %19 : vector<128x128xf32>
      %21 = arith.truncf %20 : vector<128x128xf32> to vector<128x128xbf16>
      %c0_18 = arith.constant 0 : index
      %c0_19 = arith.constant 0 : index
      %22 = vector.load %arg6[%c0_18, %c0_19] : memref<128x128xbf16, #tpu.memory_space<vmem>>, vector<128x128xbf16>
      tpu.vector_store %arg6[%c0_18, %c0_19], %21 {strides = array<i32>} : memref<128x128xbf16, #tpu.memory_space<vmem>>, vector<128x128xbf16>,
    } else {
    }
    return
  }
  func.func @transform_0(%arg0: i32, %arg1: i32) -> (i32, i32) {
    %c0_i32 = arith.constant 0 : i32
    return %arg0, %arg1 : i32, i32
  }
  func.func @transform_1(%arg0: i32, %arg1: i32) -> (i32, i32) {
    %c0_i32 = arith.constant 0 : i32
    %c0_i32_0 = arith.constant 0 : i32
    return %arg1, %c0_i32 : i32, i32
  }
  func.func @transform_2(%arg0: i32, %arg1: i32) -> (i32, i32) {
    %c0_i32 = arith.constant 0 : i32
    %c0_i32_0 = arith.constant 0 : i32
    %c0_i32_1 = arith.constant 0 : i32
    return %c0_i32, %c0_i32_0 : i32, i32
  }
  func.func @transform_3(%arg0: i32, %arg1: i32) -> (i32, i32) {
    %c0_i32 = arith.constant 0 : i32
    %c0_i32_0 = arith.constant 0 : i32
    %c0_i32_1 = arith.constant 0 : i32
    return %c0_i32, %c0_i32_0 : i32, i32
  }
  func.func @transform_4(%arg0: i32, %arg1: i32) -> (i32, i32) {
    %c0_i32 = arith.constant 0 : i32
    %c0_i32_0 = arith.constant 0 : i32
    return %arg0, %c0_i32 : i32, i32
  }
}

</mosaic_0001>

<llo_original>
// kernel: tpu_custom_call.1
$region0: #{tpu_custom_call.1}
  #allocation0 [shape = 'u32[]', space=smem, size = 0x4, offset = 0x4, fixed_abs, tag = 'smem constant byte address 0x4 - core index']
  #allocation1 [shape = 'u32[144,128]{1,0:T(1,128)}', space=vmem, size = 0x12000, scoped, tag = 'internal scratch']
  #allocation2 [shape = 'f32[128,32]{1,0:T(8,128)}', space=vmem, size = 0x10000, scoped, tag = 'scratch operand']
  %s0 = inlined_call_operand.hbm [shape: bf16[256,256], index: 0, kind: input, shape index: {}]
  %s1 = inlined_call_operand.vmem [shape: bf16[256,32], index: 1, kind: input, shape index: {}]
  %s2 = inlined_call_operand.vmem [shape: bf16[32,128], index: 2, kind: input, shape index: {}]
  %s3 = inlined_call_operand.vmem [shape: f32[1,128], index: 3, kind: input, shape index: {}]
  %s4 = inlined_call_operand.hbm [shape: bf16[256,128], index: 4, kind: output, shape index: {}]
  %s5 = sld [smem:[#allocation0]]
  $region61: #{tpu_custom_call.1} parent=0
    _
  %s7 = ssub.s32 1, %s5
  %s8 = scalar_select 0, %s7, %s5
  $region1: #{tpu_custom_call.1} parent=0
    #allocation3 [shape = 'u8[131072]{0}', space=vmem, size = 0x20000, scoped, tag = 'input window, operand 0']
    #allocation4 [shape = 's32[2]{0}', space=sflag, size = 0x8, scoped, tag = 'scoped memory for tpu_custom_call.1']
    #allocation5 [shape = 's32[2]{0}', space=sflag, size = 0x8, scoped, tag = 'scoped memory for tpu_custom_call.1']
    #allocation6 [shape = 'u8[65536]{0}', space=vmem, size = 0x10000, scoped, tag = 'output window, operand 0']
    %9 = vsyncpa [#allocation4], 0
    %s10 = scalar_lea.sflag [#allocation4], 1
    %11 = vsyncpa %s10, 0
    %12 = vsyncpa [#allocation5], 0
    %s13 = scalar_lea.sflag [#allocation5], 1
    %14 = vsyncpa %s13, 0
    loop: start=0, step=1, limit=4
    $region2: #{tpu_custom_call.1} parent=1 // loop_pre_header
      _
    $region3: #{tpu_custom_call.1} parent=1 // loop_header
      %s16 = sphi 0, %s20
      %p17 = scmp.ge.s32.totalorder %s16, 4
      %s23 = sphi 0, %s35
      %s24 = sphi 0, %s31
      %s25 = sphi 0, %s23
      %s26 = sphi 0, %s24
      %s27 = sphi 0, %s25
      %s28 = sphi 0, %s26
      %s40 = sphi 0, %s42
      %s43 = sphi 0, %s40
      %s44 = sphi 0, %s43
      %s60 = sphi 0, %s44
      %s66 = sphi 0, %s68
      %s69 = sphi 0, %s66
      %s70 = sphi 0, %s69
      %s86 = sphi 0, %s70
      %s90 = sphi 0, %s90
      %s92 = sphi 0, %s90
      %s93 = sphi 0, %s92
      %s107 = sphi 0, %s93
      %s111 = sphi 0, %s111
      %s113 = sphi 0, %s111
      %s114 = sphi 0, %s113
      %s128 = sphi 0, %s114
      %s134 = sphi 0, %s136
      %s137 = sphi 0, %s134
      %s138 = sphi 0, %s137
      %s154 = sphi 0, %s138
    $region4: #{tpu_custom_call.1} parent=1 // loop_header_branch
      %19 = sbr.rel (%p17) target = $region8
    $region5: #{tpu_custom_call.1} parent=1 // loop_body
      %s21 = ssub.s32 %s16, 1
      %s22 = ssub.s32 %s16, 2
      %s29 = sadd.s32 1, %s24
      %p30 = scmp.ge.s32.totalorder %s29, 1
      %s31 = scalar_select %p30, 0, %s29
      %s32 = sadd.s32 1, %s23
      %s33 = scalar_select %p30, %s32, %s23
      %p34 = scmp.ge.s32.totalorder %s33, 2
      %s35 = scalar_select %p34, 0, %s33
      %s36 = ssub.s32 %s23, %s35
      %s37 = ssub.s32 %s24, %s31
      %s38 = sor.u32 %s36, %s37
      %p39 = scmp.eq.s32.totalorder %s38, 0
      %s41 = sadd.s32 %s40, 1
      %s42 = scalar_select %p39, %s40, %s41
      %p45 = pneg %p39
      %p46 = scmp.eq.s32.totalorder %s16, 1
      %p47 = por %p45, %p46
      %p48 = scmp.ne.s32.totalorder %s40, %s43
      %p49 = scmp.eq.s32.totalorder %s16, 0
      %p50 = por %p48, %p49
      %p51 = scmp.ne.s32.totalorder %s40, %s43
      %p52 = scmp.eq.s32.totalorder %s21, 1
      %p53 = por %p51, %p52
      %p54 = scmp.ne.s32.totalorder %s43, %s44
      %p55 = scmp.eq.s32.totalorder %s21, 0
      %p56 = por %p54, %p55
      %p57 = scmp.ne.s32.totalorder %s43, %s44
      %p58 = scmp.eq.s32.totalorder %s22, 1
      %p59 = por %p57, %p58
      %p61 = scmp.ne.s32.totalorder %s44, %s60
      %p62 = scmp.eq.s32.totalorder %s22, 0
      %p63 = por %p61, %p62
      %s64 = ssub.s32 %s24, %s31
      %p65 = scmp.eq.s32.totalorder %s64, 0
      %s67 = sadd.s32 %s66, 1
      %s68 = scalar_select %p65, %s66, %s67
      %p71 = pneg %p65
      %p72 = scmp.eq.s32.totalorder %s16, 1
      %p73 = por %p71, %p72
      %p74 = scmp.ne.s32.totalorder %s66, %s69
      %p75 = scmp.eq.s32.totalorder %s16, 0
      %p76 = por %p74, %p75
      %p77 = scmp.ne.s32.totalorder %s66, %s69
      %p78 = scmp.eq.s32.totalorder %s21, 1
      %p79 = por %p77, %p78
      %p80 = scmp.ne.s32.totalorder %s69, %s70
      %p81 = scmp.eq.s32.totalorder %s21, 0
      %p82 = por %p80, %p81
      %p83 = scmp.ne.s32.totalorder %s69, %s70
      %p84 = scmp.eq.s32.totalorder %s22, 1
      %p85 = por %p83, %p84
      %p87 = scmp.ne.s32.totalorder %s70, %s86
      %p88 = scmp.eq.s32.totalorder %s22, 0
      %p89 = por %p87, %p88
      %s91 = sadd.s32 %s90, 1
      %p94 = scmp.eq.s32.totalorder %s16, 1
      %p95 = scmp.ne.s32.totalorder %s90, %s92
      %p96 = scmp.eq.s32.totalorder %s16, 0
      %p97 = por %p95, %p96
      %p98 = scmp.ne.s32.totalorder %s90, %s92
      %p99 = scmp.eq.s32.totalorder %s21, 1
      %p100 = por %p98, %p99
      %p101 = scmp.ne.s32.totalorder %s92, %s93
      %p102 = scmp.eq.s32.totalorder %s21, 0
      %p103 = por %p101, %p102
      %p104 = scmp.ne.s32.totalorder %s92, %s93
      %p105 = scmp.eq.s32.totalorder %s22, 1
      %p106 = por %p104, %p105
      %p108 = scmp.ne.s32.totalorder %s93, %s107
      %p109 = scmp.eq.s32.totalorder %s22, 0
      %p110 = por %p108, %p109
      %s112 = sadd.s32 %s111, 1
      %p115 = scmp.eq.s32.totalorder %s16, 1
      %p116 = scmp.ne.s32.totalorder %s111, %s113
      %p117 = scmp.eq.s32.totalorder %s16, 0
      %p118 = por %p116, %p117
      %p119 = scmp.ne.s32.totalorder %s111, %s113
      %p120 = scmp.eq.s32.totalorder %s21, 1
      %p121 = por %p119, %p120
      %p122 = scmp.ne.s32.totalorder %s113, %s114
      %p123 = scmp.eq.s32.totalorder %s21, 0
      %p124 = por %p122, %p123
      %p125 = scmp.ne.s32.totalorder %s113, %s114
      %p126 = scmp.eq.s32.totalorder %s22, 1
      %p127 = por %p125, %p126
      %p129 = scmp.ne.s32.totalorder %s114, %s128
      %p130 = scmp.eq.s32.totalorder %s22, 0
      %p131 = por %p129, %p130
      %s132 = ssub.s32 %s23, %s35
      %p133 = scmp.eq.s32.totalorder %s132, 0
      %s135 = sadd.s32 %s134, 1
      %s136 = scalar_select %p133, %s134, %s135
      %p139 = pneg %p133
      %p140 = scmp.eq.s32.totalorder %s16, 1
      %p141 = por %p139, %p140
      %p142 = scmp.ne.s32.totalorder %s134, %s137
      %p143 = scmp.eq.s32.totalorder %s16, 0
      %p144 = por %p142, %p143
      %p145 = scmp.ne.s32.totalorder %s134, %s137
      %p146 = scmp.eq.s32.totalorder %s21, 1
      %p147 = por %p145, %p146
      %p148 = scmp.ne.s32.totalorder %s137, %s138
      %p149 = scmp.eq.s32.totalorder %s21, 0
      %p150 = por %p148, %p149
      %p151 = scmp.ne.s32.totalorder %s137, %s138
      %p152 = scmp.eq.s32.totalorder %s22, 1
      %p153 = por %p151, %p152
      %p155 = scmp.ne.s32.totalorder %s138, %s154
      %p156 = scmp.eq.s32.totalorder %s22, 0
      %p157 = por %p155, %p156
      %p158 = scmp.le.s32.totalorder 1, %s16
      %p159 = scmp.lt.s32.totalorder %s16, 3
      %p160 = pnand %p158, %p159
      %p161 = pneg %p160
      // Predicated region
      $region9: #{tpu_custom_call.1} parent=5 // pred_check
        _
      $region10: #{tpu_custom_call.1} parent=5 // pred_check_branch
        %163 = sbr.rel (%p160) target = $region12
      $region11: #{tpu_custom_call.1} parent=5 // pred_region
        %s164 = ssub.s32 %s16, 1
        // Predicated region
        $region13: #{tpu_custom_call.1} parent=11 // pred_check
          %p165 = pneg %p82
        $region14: #{tpu_custom_call.1} parent=11 // pred_check_branch
          %167 = sbr.rel (%p165) target = $region16
        $region15: #{tpu_custom_call.1} parent=11 // pred_region
          %s168 = smul.u32 32, %s26
          %p169 = scmp.lt.s32.totalorder %s168, 31
          %s170 = scalar_select %p169, %s168, 31
          %s171 = smul.addr %s170, 4
          %s172 = scalar_lea.vmem %s1, %s171
          %s173 = smul.u32 32, %s26
        $region16: #{tpu_custom_call.1} parent=11 // pred_fallthru
          _
        // Predicated region
        $region17: #{tpu_custom_call.1} parent=11 // pred_check
          %p174 = pneg %p103
        $region18: #{tpu_custom_call.1} parent=11 // pred_check_branch
          %176 = sbr.rel (%p174) target = $region20
        $region19: #{tpu_custom_call.1} parent=11 // pred_region
          _
        $region20: #{tpu_custom_call.1} parent=11 // pred_fallthru
          _
        // Predicated region
        $region21: #{tpu_custom_call.1} parent=11 // pred_check
          %p177 = pneg %p124
        $region22: #{tpu_custom_call.1} parent=11 // pred_check_branch
          %179 = sbr.rel (%p177) target = $region24
        $region23: #{tpu_custom_call.1} parent=11 // pred_region
          _
        $region24: #{tpu_custom_call.1} parent=11 // pred_fallthru
          _
      $region12: #{tpu_custom_call.1} parent=5 // pred_fallthru
        _
      %p180 = scmp.lt.s32.totalorder %s16, 2
      // Predicated region
      $region25: #{tpu_custom_call.1} parent=5 // pred_check
        %p181 = pneg %p180
      $region26: #{tpu_custom_call.1} parent=5 // pred_check_branch
        %183 = sbr.rel (%p181) target = $region28
      $region27: #{tpu_custom_call.1} parent=5 // pred_region
        // Predicated region
        $region29: #{tpu_custom_call.1} parent=27 // pred_check
          %p184 = pneg %p50
        $region30: #{tpu_custom_call.1} parent=27 // pred_check_branch
          %186 = sbr.rel (%p184) target = $region32
        $region31: #{tpu_custom_call.1} parent=27 // pred_region
          %s187 = sand.u32 %s40, 1
          %s188 = scalar_lea.sflag [#allocation4], %s187
          %s189 = sand.u32 %s40, 1
          %s190 = smul.addr %s189, 128
          %s191 = scalar_lea.vmem [#allocation3], %s190
          %s192 = smul.u32 16, %s23
          %s193 = smul.u32 2, %s24
          %s195 = ssub.s32 2048, 2048
          %196 = vsyncadd %s188, %s195
          %s197 = smul.addr %s192, 2
          %s198 = sadd.s32 %s193, %s197
          %s199 = smul.addr %s198, 64
          %s200 = scalar_lea.hbm %s0, %s199
          %s201 = sshll.u32 %s191, 4
          %s202 = int_to_ptr.vmem [resolvable:$true] %s201
          %207 = dma.hbm_to_vmem [thread:$0]  %s200, 2048, %s202, %s188, 128, 128, 8
        $region32: #{tpu_custom_call.1} parent=27 // pred_fallthru
          _
      $region28: #{tpu_custom_call.1} parent=5 // pred_fallthru
        _
      %p208 = scmp.le.s32.totalorder 1, %s16
      %p209 = scmp.lt.s32.totalorder %s16, 3
      %p210 = pnand %p208, %p209
      %p211 = pneg %p210
      // Predicated region
      $region33: #{tpu_custom_call.1} parent=5 // pred_check
        _
      $region34: #{tpu_custom_call.1} parent=5 // pred_check_branch
        %213 = sbr.rel (%p210) target = $region36
      $region35: #{tpu_custom_call.1} parent=5 // pred_region
        %s214 = ssub.s32 %s16, 1
        %s215 = sand.u32 %s43, 1
        %s216 = scalar_lea.sflag [#allocation4], %s215
        %s217 = sand.u32 %s43, 1
        %s218 = smul.addr %s217, 128
        %s219 = scalar_lea.vmem [#allocation3], %s218
        // Predicated region
        $region37: #{tpu_custom_call.1} parent=35 // pred_check
          %p220 = pneg %p56
        $region38: #{tpu_custom_call.1} parent=35 // pred_check_branch
          %222 = sbr.rel (%p220) target = $region40
        $region39: #{tpu_custom_call.1} parent=35 // pred_region
          %223 = dma.done %s216, 2048
        $region40: #{tpu_custom_call.1} parent=35 // pred_fallthru
          _
        %s224 = sand.u32 %s43, 1
        %s225 = scalar_lea.sflag [#allocation4], %s224
        %s226 = sand.u32 %s43, 1
        %s227 = smul.addr %s226, 128
        %s228 = scalar_lea.vmem [#allocation3], %s227
        %p229 = pneg %p56
        %p230 = pneg %p53
        %s231 = smul.u32 32, %s26
        %p232 = scmp.lt.s32.totalorder %s231, 31
        %s233 = scalar_select %p232, %s231, 31
        %s234 = smul.addr %s233, 4
        %s235 = scalar_lea.vmem %s1, %s234
        %p236 = pneg %p82
        %p237 = pneg %p79
        %p238 = pneg %p103
        %p239 = pneg %p100
        %p240 = pneg %p124
        %p241 = pneg %p121
        %p242 = pneg %p150
        %p243 = pneg %p147
        %s244 = sand.u32 %s137, 1
        %s245 = scalar_lea.sflag [#allocation5], %s244
        %s246 = sand.u32 %s137, 1
        %s247 = smul.addr %s246, 64
        %s248 = scalar_lea.vmem [#allocation6], %s247
        %s249 = smul.u32 16, %s25
        %s250 = smul.u32 2, %s26
        %s251 = smul.u32 32, %s26
        %p252 = scmp.lt.s32.totalorder %s251, 31
        %s253 = scalar_select %p252, %s251, 31
        %s254 = smul.addr %s253, 4
        %s255 = scalar_lea.vmem %s1, %s254
        %s256 = smul.u32 32, %s26
        %s257 = smul.u32 16, %s25
        %p259 = scmp.eq.s32.totalorder %s26, 0
        // Predicated region
        $region41: #{tpu_custom_call.1} parent=35 // pred_check
          %p260 = pneg %p259
        $region42: #{tpu_custom_call.1} parent=35 // pred_check_branch
          %262 = sbr.rel (%p260) target = $region44
        $region43: #{tpu_custom_call.1} parent=35 // pred_region
          %vm263 = vcmask 261120
          %264 = vst.msk [vmem:[#allocation2] sm:$0xff] %vm263, 0.0
          %265 = vst.msk [vmem:[#allocation2 + $0x8] sm:$0xff] %vm263, 0.0
          %266 = vst.msk [vmem:[#allocation2 + $0x10] sm:$0xff] %vm263, 0.0
          %267 = vst.msk [vmem:[#allocation2 + $0x18] sm:$0xff] %vm263, 0.0
          %268 = vst.msk [vmem:[#allocation2 + $0x20] sm:$0xff] %vm263, 0.0
          %269 = vst.msk [vmem:[#allocation2 + $0x28] sm:$0xff] %vm263, 0.0
          %270 = vst.msk [vmem:[#allocation2 + $0x30] sm:$0xff] %vm263, 0.0
          %271 = vst.msk [vmem:[#allocation2 + $0x38] sm:$0xff] %vm263, 0.0
          %272 = vst.msk [vmem:[#allocation2 + $0x40] sm:$0xff] %vm263, 0.0
          %273 = vst.msk [vmem:[#allocation2 + $0x48] sm:$0xff] %vm263, 0.0
          %274 = vst.msk [vmem:[#allocation2 + $0x50] sm:$0xff] %vm263, 0.0
          %275 = vst.msk [vmem:[#allocation2 + $0x58] sm:$0xff] %vm263, 0.0
          %276 = vst.msk [vmem:[#allocation2 + $0x60] sm:$0xff] %vm263, 0.0
          %277 = vst.msk [vmem:[#allocation2 + $0x68] sm:$0xff] %vm263, 0.0
          %278 = vst.msk [vmem:[#allocation2 + $0x70] sm:$0xff] %vm263, 0.0
          %279 = vst.msk [vmem:[#allocation2 + $0x78] sm:$0xff] %vm263, 0.0
        $region44: #{tpu_custom_call.1} parent=35 // pred_fallthru
          _
        %v280 = vld [vmem:[#allocation2] sm:$0xff]
        %v281 = vld [vmem:[#allocation2 + $0x8] sm:$0xff]
        %v282 = vld [vmem:[#allocation2 + $0x10] sm:$0xff]
        %v283 = vld [vmem:[#allocation2 + $0x18] sm:$0xff]
        %v284 = vld [vmem:[#allocation2 + $0x20] sm:$0xff]
        %v285 = vld [vmem:[#allocation2 + $0x28] sm:$0xff]
        %v286 = vld [vmem:[#allocation2 + $0x30] sm:$0xff]
        %v287 = vld [vmem:[#allocation2 + $0x38] sm:$0xff]
        %v288 = vld [vmem:[#allocation2 + $0x40] sm:$0xff]
        %v289 = vld [vmem:[#allocation2 + $0x48] sm:$0xff]
        %v290 = vld [vmem:[#allocation2 + $0x50] sm:$0xff]
        %v291 = vld [vmem:[#allocation2 + $0x58] sm:$0xff]
        %v292 = vld [vmem:[#allocation2 + $0x60] sm:$0xff]
        %v293 = vld [vmem:[#allocation2 + $0x68] sm:$0xff]
        %v294 = vld [vmem:[#allocation2 + $0x70] sm:$0xff]
        %v295 = vld [vmem:[#allocation2 + $0x78] sm:$0xff]
        %v296 = vld [vmem:[%s219] sm:$0xff]
        %v297 = vld [vmem:[%s219 + $0x8] sm:$0xff]
        %v298 = vld [vmem:[%s219 + $0x10] sm:$0xff]
        %v299 = vld [vmem:[%s219 + $0x18] sm:$0xff]
        %v300 = vld [vmem:[%s219 + $0x20] sm:$0xff]
        %v301 = vld [vmem:[%s219 + $0x28] sm:$0xff]
        %v302 = vld [vmem:[%s219 + $0x30] sm:$0xff]
        %v303 = vld [vmem:[%s219 + $0x38] sm:$0xff]
        %v304 = vld [vmem:[%s219 + $0x40] sm:$0xff]
        %v305 = vld [vmem:[%s219 + $0x48] sm:$0xff]
        %v306 = vld [vmem:[%s219 + $0x50] sm:$0xff]
        %v307 = vld [vmem:[%s219 + $0x58] sm:$0xff]
        %v308 = vld [vmem:[%s219 + $0x60] sm:$0xff]
        %v309 = vld [vmem:[%s219 + $0x68] sm:$0xff]
        %v310 = vld [vmem:[%s219 + $0x70] sm:$0xff]
        %v311 = vld [vmem:[%s219 + $0x78] sm:$0xff]
        %v312 = vld [vmem:[%s255] sm:$0xf]
        %v313 = vld [vmem:[%s255 + $0x4] sm:$0xf]
        %v314 = vld [vmem:[%s255 + $0x8] sm:$0xf]
        %v315 = vld [vmem:[%s255 + $0xc] sm:$0xf]
        %v316 = vld [vmem:[%s255 + $0x10] sm:$0xf]
        %v317 = vld [vmem:[%s255 + $0x14] sm:$0xf]
        %v318 = vld [vmem:[%s255 + $0x18] sm:$0xf]
        %v319 = vld [vmem:[%s255 + $0x1c] sm:$0xf]
        %v320 = vld [vmem:[%s255 + $0x20] sm:$0xf]
        %v321 = vld [vmem:[%s255 + $0x24] sm:$0xf]
        %v322 = vld [vmem:[%s255 + $0x28] sm:$0xf]
        %v323 = vld [vmem:[%s255 + $0x2c] sm:$0xf]
        %v324 = vld [vmem:[%s255 + $0x30] sm:$0xf]
        %v325 = vld [vmem:[%s255 + $0x34] sm:$0xf]
        %v326 = vld [vmem:[%s255 + $0x38] sm:$0xf]
        %v327 = vld [vmem:[%s255 + $0x3c] sm:$0xf]
        %v328 = vld [vmem:[%s255 + $0x40] sm:$0xf]
        %v329 = vld [vmem:[%s255 + $0x44] sm:$0xf]
        %v330 = vld [vmem:[%s255 + $0x48] sm:$0xf]
        %v331 = vld [vmem:[%s255 + $0x4c] sm:$0xf]
        %v332 = vld [vmem:[%s255 + $0x50] sm:$0xf]
        %v333 = vld [vmem:[%s255 + $0x54] sm:$0xf]
        %v334 = vld [vmem:[%s255 + $0x58] sm:$0xf]
        %v335 = vld [vmem:[%s255 + $0x5c] sm:$0xf]
        %v336 = vld [vmem:[%s255 + $0x60] sm:$0xf]
        %v337 = vld [vmem:[%s255 + $0x64] sm:$0xf]
        %v338 = vld [vmem:[%s255 + $0x68] sm:$0xf]
        %v339 = vld [vmem:[%s255 + $0x6c] sm:$0xf]
        %v340 = vld [vmem:[%s255 + $0x70] sm:$0xf]
        %v341 = vld [vmem:[%s255 + $0x74] sm:$0xf]
        %v342 = vld [vmem:[%s255 + $0x78] sm:$0xf]
        %v343 = vld [vmem:[%s255 + $0x7c] sm:$0xf]
        %v360 = vunpack.c.l.b16 %v296
        %v361 = vunpack.c.h.b16 %v296
        %v362 = vunpack.c.l.b16 %v297
        %v363 = vunpack.c.h.b16 %v297
        %v364 = vunpack.c.l.b16 %v298
        %v365 = vunpack.c.h.b16 %v298
        %v366 = vunpack.c.l.b16 %v299
        %v367 = vunpack.c.h.b16 %v299
        %v368 = vunpack.c.l.b16 %v300
        %v369 = vunpack.c.h.b16 %v300
        %v370 = vunpack.c.l.b16 %v301
        %v371 = vunpack.c.h.b16 %v301
        %v372 = vunpack.c.l.b16 %v302
        %v373 = vunpack.c.h.b16 %v302
        %v374 = vunpack.c.l.b16 %v303
        %v375 = vunpack.c.h.b16 %v303
        %v376 = vunpack.c.l.b16 %v304
        %v377 = vunpack.c.h.b16 %v304
        %v378 = vunpack.c.l.b16 %v305
        %v379 = vunpack.c.h.b16 %v305
        %v380 = vunpack.c.l.b16 %v306
        %v381 = vunpack.c.h.b16 %v306
        %v382 = vunpack.c.l.b16 %v307
        %v383 = vunpack.c.h.b16 %v307
        %v384 = vunpack.c.l.b16 %v308
        %v385 = vunpack.c.h.b16 %v308
        %v386 = vunpack.c.l.b16 %v309
        %v387 = vunpack.c.h.b16 %v309
        %v388 = vunpack.c.l.b16 %v310
        %v389 = vunpack.c.h.b16 %v310
        %v390 = vunpack.c.l.b16 %v311
        %v391 = vunpack.c.h.b16 %v311
        %v392 = vpack.c.b16 %v362, %v360
        %v393 = vpack.c.b16 %v363, %v361
        %v394 = vpack.c.b16 %v366, %v364
        %v395 = vpack.c.b16 %v367, %v365
        %v396 = vpack.c.b16 %v370, %v368
        %v397 = vpack.c.b16 %v371, %v369
        %v398 = vpack.c.b16 %v374, %v372
        %v399 = vpack.c.b16 %v375, %v373
        %v400 = vpack.c.b16 %v378, %v376
        %v401 = vpack.c.b16 %v379, %v377
        %v402 = vpack.c.b16 %v382, %v380
        %v403 = vpack.c.b16 %v383, %v381
        %v404 = vpack.c.b16 %v386, %v384
        %v405 = vpack.c.b16 %v387, %v385
        %v406 = vpack.c.b16 %v390, %v388
        %v407 = vpack.c.b16 %v391, %v389
        %v456 = vunpack.c.l.b16 %v312
        %v457 = vunpack.c.l.b16 %v313
        %v458 = vunpack.c.l.b16 %v314
        %v459 = vunpack.c.l.b16 %v315
        %v460 = vunpack.c.l.b16 %v316
        %v461 = vunpack.c.l.b16 %v317
        %v462 = vunpack.c.l.b16 %v318
        %v463 = vunpack.c.l.b16 %v319
        %v464 = vunpack.c.l.b16 %v320
        %v465 = vunpack.c.l.b16 %v321
        %v466 = vunpack.c.l.b16 %v322
        %v467 = vunpack.c.l.b16 %v323
        %v468 = vunpack.c.l.b16 %v324
        %v469 = vunpack.c.l.b16 %v325
        %v470 = vunpack.c.l.b16 %v326
        %v471 = vunpack.c.l.b16 %v327
        %v472 = vunpack.c.l.b16 %v328
        %v473 = vunpack.c.l.b16 %v329
        %v474 = vunpack.c.l.b16 %v330
        %v475 = vunpack.c.l.b16 %v331
        %v476 = vunpack.c.l.b16 %v332
        %v477 = vunpack.c.l.b16 %v333
        %v478 = vunpack.c.l.b16 %v334
        %v479 = vunpack.c.l.b16 %v335
        %v480 = vunpack.c.l.b16 %v336
        %v481 = vunpack.c.l.b16 %v337
        %v482 = vunpack.c.l.b16 %v338
        %v483 = vunpack.c.l.b16 %v339
        %v484 = vunpack.c.l.b16 %v340
        %v485 = vunpack.c.l.b16 %v341
        %v486 = vunpack.c.l.b16 %v342
        %v487 = vunpack.c.l.b16 %v343
        %v488 = vpack.c.b16 %v457, %v456
        %v489 = vpack.c.b16 %v459, %v458
        %v490 = vpack.c.b16 %v461, %v460
        %v491 = vpack.c.b16 %v463, %v462
        %v492 = vpack.c.b16 %v465, %v464
        %v493 = vpack.c.b16 %v467, %v466
        %v494 = vpack.c.b16 %v469, %v468
        %v495 = vpack.c.b16 %v471, %v470
        %v496 = vpack.c.b16 %v473, %v472
        %v497 = vpack.c.b16 %v475, %v474
        %v498 = vpack.c.b16 %v477, %v476
        %v499 = vpack.c.b16 %v479, %v478
        %v500 = vpack.c.b16 %v481, %v480
        %v501 = vpack.c.b16 %v483, %v482
        %v502 = vpack.c.b16 %v485, %v484
        %v503 = vpack.c.b16 %v487, %v486
        %520 = vmatprep.subr.bf16.mxu0 0
        %521 = vmatpush1.bf16.msra.mxu0 %v488
        %522 = vmatprep.subr.bf16.mxu0 0
        %523 = vmatpush1.bf16.msra.mxu0 %v489
        %524 = vmatprep.subr.bf16.mxu0 0
        %525 = vmatpush1.bf16.msra.mxu0 %v490
        %526 = vmatprep.subr.bf16.mxu0 0
        %527 = vmatpush1.bf16.msra.mxu0 %v491
        %528 = vmatprep.subr.bf16.mxu0 0
        %529 = vmatpush1.bf16.msra.mxu0 %v492
        %530 = vmatprep.subr.bf16.mxu0 0
        %531 = vmatpush1.bf16.msra.mxu0 %v493
        %532 = vmatprep.subr.bf16.mxu0 0
        %533 = vmatpush1.bf16.msra.mxu0 %v494
        %534 = vmatprep.subr.bf16.mxu0 0
        %535 = vmatpush1.bf16.msra.mxu0 %v495
        %536 = vmatprep.subr.bf16.mxu0 0
        %537 = vmatpush1.bf16.msra.mxu0 %v496
        %538 = vmatprep.subr.bf16.mxu0 0
        %539 = vmatpush1.bf16.msra.mxu0 %v497
        %540 = vmatprep.subr.bf16.mxu0 0
        %541 = vmatpush1.bf16.msra.mxu0 %v498
        %542 = vmatprep.subr.bf16.mxu0 0
        %543 = vmatpush1.bf16.msra.mxu0 %v499
        %544 = vmatprep.subr.bf16.mxu0 0
        %545 = vmatpush1.bf16.msra.mxu0 %v500
        %546 = vmatprep.subr.bf16.mxu0 0
        %547 = vmatpush1.bf16.msra.mxu0 %v501
        %548 = vmatprep.subr.bf16.mxu0 0
        %549 = vmatpush1.bf16.msra.mxu0 %v502
        %550 = vmatprep.subr.bf16.mxu0 0
        %551 = vmatpush1.bf16.msra.mxu0 %v503
        %552 = vmatprep.mubr.bf16.mxu0 %v393
        %553 = vmatmul.mubr.bf16.gmra.mrb[0].mxu0 %v392
        %v554 = vpop.f32.mrb[0].mxu0
        %v555 = vadd.f32 0.0, %v554
        %v556 = vpop.f32.mrb[0].mxu0
        %v557 = vpop.f32.mrb[0].mxu0
        %v558 = vadd.f32 0.0, %v557
        %v559 = vpop.f32.mrb[0].mxu0
        %560 = vmatprep.mubr.bf16.mxu0 %v395
        %561 = vmatmul.mubr.bf16.gmra.mrb[0].mxu0 %v394
        %v562 = vpop.f32.mrb[0].mxu0
        %v563 = vadd.f32 0.0, %v562
        %v564 = vpop.f32.mrb[0].mxu0
        %v565 = vpop.f32.mrb[0].mxu0
        %v566 = vadd.f32 0.0, %v565
        %v567 = vpop.f32.mrb[0].mxu0
        %568 = vmatprep.mubr.bf16.mxu0 %v397
        %569 = vmatmul.mubr.bf16.gmra.mrb[0].mxu0 %v396
        %v570 = vpop.f32.mrb[0].mxu0
        %v571 = vadd.f32 0.0, %v570
        %v572 = vpop.f32.mrb[0].mxu0
        %v573 = vpop.f32.mrb[0].mxu0
        %v574 = vadd.f32 0.0, %v573
        %v575 = vpop.f32.mrb[0].mxu0
        %576 = vmatprep.mubr.bf16.mxu0 %v399
        %577 = vmatmul.mubr.bf16.gmra.mrb[0].mxu0 %v398
        %v578 = vpop.f32.mrb[0].mxu0
        %v579 = vadd.f32 0.0, %v578
        %v580 = vpop.f32.mrb[0].mxu0
        %v581 = vpop.f32.mrb[0].mxu0
        %v582 = vadd.f32 0.0, %v581
        %v583 = vpop.f32.mrb[0].mxu0
        %584 = vmatprep.mubr.bf16.mxu0 %v401
        %585 = vmatmul.mubr.bf16.gmra.mrb[0].mxu0 %v400
        %v586 = vpop.f32.mrb[0].mxu0
        %v587 = vadd.f32 0.0, %v586
        %v588 = vpop.f32.mrb[0].mxu0
        %v589 = vpop.f32.mrb[0].mxu0
        %v590 = vadd.f32 0.0, %v589
        %v591 = vpop.f32.mrb[0].mxu0
        %592 = vmatprep.mubr.bf16.mxu0 %v403
        %593 = vmatmul.mubr.bf16.gmra.mrb[0].mxu0 %v402
        %v594 = vpop.f32.mrb[0].mxu0
        %v595 = vadd.f32 0.0, %v594
        %v596 = vpop.f32.mrb[0].mxu0
        %v597 = vpop.f32.mrb[0].mxu0
        %v598 = vadd.f32 0.0, %v597
        %v599 = vpop.f32.mrb[0].mxu0
        %600 = vmatprep.mubr.bf16.mxu0 %v405
        %601 = vmatmul.mubr.bf16.gmra.mrb[0].mxu0 %v404
        %v602 = vpop.f32.mrb[0].mxu0
        %v603 = vadd.f32 0.0, %v602
        %v604 = vpop.f32.mrb[0].mxu0
        %v605 = vpop.f32.mrb[0].mxu0
        %v606 = vadd.f32 0.0, %v605
        %v607 = vpop.f32.mrb[0].mxu0
        %608 = vmatprep.mubr.bf16.mxu0 %v407
        %609 = vmatmul.mubr.bf16.gmra.mrb[0].mxu0 %v406
        %v610 = vpop.f32.mrb[0].mxu0
        %v611 = vadd.f32 0.0, %v610
        %v612 = vpop.f32.mrb[0].mxu0
        %v613 = vpop.f32.mrb[0].mxu0
        %v614 = vadd.f32 0.0, %v613
        %v615 = vpop.f32.mrb[0].mxu0
        %616 = vdwg.mxu0
        %v617 = vadd.f32 %v280, %v555
        %v618 = vadd.f32 %v281, %v558
        %v619 = vadd.f32 %v282, %v563
        %v620 = vadd.f32 %v283, %v566
        %v621 = vadd.f32 %v284, %v571
        %v622 = vadd.f32 %v285, %v574
        %v623 = vadd.f32 %v286, %v579
        %v624 = vadd.f32 %v287, %v582
        %v625 = vadd.f32 %v288, %v587
        %v626 = vadd.f32 %v289, %v590
        %v627 = vadd.f32 %v290, %v595
        %v628 = vadd.f32 %v291, %v598
        %v629 = vadd.f32 %v292, %v603
        %v630 = vadd.f32 %v293, %v606
        %v631 = vadd.f32 %v294, %v611
        %v632 = vadd.f32 %v295, %v614
        %vm633 = vcmask 261120
        %634 = vst.msk [vmem:[#allocation2] sm:$0xff] %vm633, %v617
        %635 = vst.msk [vmem:[#allocation2 + $0x8] sm:$0xff] %vm633, %v618
        %636 = vst.msk [vmem:[#allocation2 + $0x10] sm:$0xff] %vm633, %v619
        %637 = vst.msk [vmem:[#allocation2 + $0x18] sm:$0xff] %vm633, %v620
        %638 = vst.msk [vmem:[#allocation2 + $0x20] sm:$0xff] %vm633, %v621
        %639 = vst.msk [vmem:[#allocation2 + $0x28] sm:$0xff] %vm633, %v622
        %640 = vst.msk [vmem:[#allocation2 + $0x30] sm:$0xff] %vm633, %v623
        %641 = vst.msk [vmem:[#allocation2 + $0x38] sm:$0xff] %vm633, %v624
        %642 = vst.msk [vmem:[#allocation2 + $0x40] sm:$0xff] %vm633, %v625
        %643 = vst.msk [vmem:[#allocation2 + $0x48] sm:$0xff] %vm633, %v626
        %644 = vst.msk [vmem:[#allocation2 + $0x50] sm:$0xff] %vm633, %v627
        %645 = vst.msk [vmem:[#allocation2 + $0x58] sm:$0xff] %vm633, %v628
        %646 = vst.msk [vmem:[#allocation2 + $0x60] sm:$0xff] %vm633, %v629
        %647 = vst.msk [vmem:[#allocation2 + $0x68] sm:$0xff] %vm633, %v630
        %648 = vst.msk [vmem:[#allocation2 + $0x70] sm:$0xff] %vm633, %v631
        %649 = vst.msk [vmem:[#allocation2 + $0x78] sm:$0xff] %vm633, %v632
        // Predicated region
        $region45: #{tpu_custom_call.1} parent=35 // pred_check
          %p650 = pneg %p259
        $region46: #{tpu_custom_call.1} parent=35 // pred_check_branch
          %652 = sbr.rel (%p650) target = $region48
        $region47: #{tpu_custom_call.1} parent=35 // pred_region
          %v653 = vld [vmem:[#allocation2] sm:$0xff]
          %v654 = vld [vmem:[#allocation2 + $0x8] sm:$0xff]
          %v655 = vld [vmem:[#allocation2 + $0x10] sm:$0xff]
          %v656 = vld [vmem:[#allocation2 + $0x18] sm:$0xff]
          %v657 = vld [vmem:[#allocation2 + $0x20] sm:$0xff]
          %v658 = vld [vmem:[#allocation2 + $0x28] sm:$0xff]
          %v659 = vld [vmem:[#allocation2 + $0x30] sm:$0xff]
          %v660 = vld [vmem:[#allocation2 + $0x38] sm:$0xff]
          %v661 = vld [vmem:[#allocation2 + $0x40] sm:$0xff]
          %v662 = vld [vmem:[#allocation2 + $0x48] sm:$0xff]
          %v663 = vld [vmem:[#allocation2 + $0x50] sm:$0xff]
          %v664 = vld [vmem:[#allocation2 + $0x58] sm:$0xff]
          %v665 = vld [vmem:[#allocation2 + $0x60] sm:$0xff]
          %v666 = vld [vmem:[#allocation2 + $0x68] sm:$0xff]
          %v667 = vld [vmem:[#allocation2 + $0x70] sm:$0xff]
          %v668 = vld [vmem:[#allocation2 + $0x78] sm:$0xff]
          %v669 = vpack.c.bf16 %v654, %v653
          %v670 = vpack.c.bf16 %v656, %v655
          %v671 = vpack.c.bf16 %v658, %v657
          %v672 = vpack.c.bf16 %v660, %v659
          %v673 = vpack.c.bf16 %v662, %v661
          %v674 = vpack.c.bf16 %v664, %v663
          %v675 = vpack.c.bf16 %v666, %v665
          %v676 = vpack.c.bf16 %v668, %v667
          %v677 = vld [vmem:[%s2] sm:$0xf]
          %v678 = vld [vmem:[%s2 + $0x4] sm:$0xf]
          %v679 = vld [vmem:[%s2 + $0x8] sm:$0xf]
          %v680 = vld [vmem:[%s2 + $0xc] sm:$0xf]
          %v681 = vld [vmem:[%s3] sm:$0x1]
          %v683 = vlaneseq
          %v684 = vshrl.u32 %v683, 7
          %v685 = vsub.s32 0, %v684
          %v686 = vrot.slane %v681, %v685
          %v692 = vunpack.c.l.b16 %v677
          %v693 = vunpack.c.l.b16 %v678
          %v694 = vunpack.c.l.b16 %v679
          %v695 = vunpack.c.l.b16 %v680
          %v696 = vpack.c.b16 %v693, %v692
          %v697 = vpack.c.b16 %v695, %v694
          %v701 = vsel %vm633, %v669, 0
          %v704 = vsel %vm633, %v670, 0
          %v707 = vsel %vm633, %v671, 0
          %v710 = vsel %vm633, %v672, 0
          %v713 = vsel %vm633, %v673, 0
          %v716 = vsel %vm633, %v674, 0
          %v719 = vsel %vm633, %v675, 0
          %v722 = vsel %vm633, %v676, 0
          %724 = vmatprep.subr.bf16.mxu0 0
          %725 = vmatpush1.bf16.msra.mxu0 %v696
          %726 = vmatprep.subr.bf16.mxu0 0
          %727 = vmatpush1.bf16.msra.mxu0 %v697
          %728 = vmatprep.subr.bf16.mxu0 0
          %729 = vmatpush1.bf16.msra.mxu0 0
          %730 = vmatprep.subr.bf16.mxu0 0
          %731 = vmatpush1.bf16.msra.mxu0 0
          %732 = vmatprep.subr.bf16.mxu0 0
          %733 = vmatpush1.bf16.msra.mxu0 0
          %734 = vmatprep.subr.bf16.mxu0 0
          %735 = vmatpush1.bf16.msra.mxu0 0
          %736 = vmatprep.subr.bf16.mxu0 0
          %737 = vmatpush1.bf16.msra.mxu0 0
          %738 = vmatprep.subr.bf16.mxu0 0
          %739 = vmatpush1.bf16.msra.mxu0 0
          %740 = vmatprep.subr.bf16.mxu0 0
          %741 = vmatpush1.bf16.msra.mxu0 0
          %742 = vmatprep.subr.bf16.mxu0 0
          %743 = vmatpush1.bf16.msra.mxu0 0
          %744 = vmatprep.subr.bf16.mxu0 0
          %745 = vmatpush1.bf16.msra.mxu0 0
          %746 = vmatprep.subr.bf16.mxu0 0
          %747 = vmatpush1.bf16.msra.mxu0 0
          %748 = vmatprep.subr.bf16.mxu0 0
          %749 = vmatpush1.bf16.msra.mxu0 0
          %750 = vmatprep.subr.bf16.mxu0 0
          %751 = vmatpush1.bf16.msra.mxu0 0
          %752 = vmatprep.subr.bf16.mxu0 0
          %753 = vmatpush1.bf16.msra.mxu0 0
          %754 = vmatprep.subr.bf16.mxu0 0
          %755 = vmatpush1.bf16.msra.mxu0 0
          %756 = vmatprep.mubr.bf16.mxu0 0
          %757 = vmatmul.mubr.bf16.gmra.mrb[0].mxu0 %v701
          %v758 = vpop.f32.mrb[0].mxu0
          %v759 = vadd.f32 %v686, %v758
          %v760 = vpop.f32.mrb[0].mxu0
          %v761 = vpop.f32.mrb[0].mxu0
          %v762 = vadd.f32 %v686, %v761
          %v763 = vpop.f32.mrb[0].mxu0
          %764 = vmatprep.mubr.bf16.mxu0 0
          %765 = vmatmul.mubr.bf16.gmra.mrb[0].mxu0 %v704
          %v766 = vpop.f32.mrb[0].mxu0
          %v767 = vadd.f32 %v686, %v766
          %v768 = vpop.f32.mrb[0].mxu0
          %v769 = vpop.f32.mrb[0].mxu0
          %v770 = vadd.f32 %v686, %v769
          %v771 = vpop.f32.mrb[0].mxu0
          %772 = vmatprep.mubr.bf16.mxu0 0
          %773 = vmatmul.mubr.bf16.gmra.mrb[0].mxu0 %v707
          %v774 = vpop.f32.mrb[0].mxu0
          %v775 = vadd.f32 %v686, %v774
          %v776 = vpop.f32.mrb[0].mxu0
          %v777 = vpop.f32.mrb[0].mxu0
          %v778 = vadd.f32 %v686, %v777
          %v779 = vpop.f32.mrb[0].mxu0
          %780 = vmatprep.mubr.bf16.mxu0 0
          %781 = vmatmul.mubr.bf16.gmra.mrb[0].mxu0 %v710
          %v782 = vpop.f32.mrb[0].mxu0
          %v783 = vadd.f32 %v686, %v782
          %v784 = vpop.f32.mrb[0].mxu0
          %v785 = vpop.f32.mrb[0].mxu0
          %v786 = vadd.f32 %v686, %v785
          %v787 = vpop.f32.mrb[0].mxu0
          %788 = vmatprep.mubr.bf16.mxu0 0
          %789 = vmatmul.mubr.bf16.gmra.mrb[0].mxu0 %v713
          %v790 = vpop.f32.mrb[0].mxu0
          %v791 = vadd.f32 %v686, %v790
          %v792 = vpop.f32.mrb[0].mxu0
          %v793 = vpop.f32.mrb[0].mxu0
          %v794 = vadd.f32 %v686, %v793
          %v795 = vpop.f32.mrb[0].mxu0
          %796 = vmatprep.mubr.bf16.mxu0 0
          %797 = vmatmul.mubr.bf16.gmra.mrb[0].mxu0 %v716
          %v798 = vpop.f32.mrb[0].mxu0
          %v799 = vadd.f32 %v686, %v798
          %v800 = vpop.f32.mrb[0].mxu0
          %v801 = vpop.f32.mrb[0].mxu0
          %v802 = vadd.f32 %v686, %v801
          %v803 = vpop.f32.mrb[0].mxu0
          %804 = vmatprep.mubr.bf16.mxu0 0
          %805 = vmatmul.mubr.bf16.gmra.mrb[0].mxu0 %v719
          %v806 = vpop.f32.mrb[0].mxu0
          %v807 = vadd.f32 %v686, %v806
          %v808 = vpop.f32.mrb[0].mxu0
          %v809 = vpop.f32.mrb[0].mxu0
          %v810 = vadd.f32 %v686, %v809
          %v811 = vpop.f32.mrb[0].mxu0
          %812 = vmatprep.mubr.bf16.mxu0 0
          %813 = vmatmul.mubr.bf16.gmra.mrb[0].mxu0 %v722
          %v814 = vpop.f32.mrb[0].mxu0
          %v815 = vadd.f32 %v686, %v814
          %v816 = vpop.f32.mrb[0].mxu0
          %v817 = vpop.f32.mrb[0].mxu0
          %v818 = vadd.f32 %v686, %v817
          %v819 = vpop.f32.mrb[0].mxu0
          %820 = vdwg.mxu0
          %v821 = vmax.f32 %v759, 0.0
          %v822 = vmax.f32 %v762, 0.0
          %v823 = vmax.f32 %v767, 0.0
          %v824 = vmax.f32 %v770, 0.0
          %v825 = vmax.f32 %v775, 0.0
          %v826 = vmax.f32 %v778, 0.0
          %v827 = vmax.f32 %v783, 0.0
          %v828 = vmax.f32 %v786, 0.0
          %v829 = vmax.f32 %v791, 0.0
          %v830 = vmax.f32 %v794, 0.0
          %v831 = vmax.f32 %v799, 0.0
          %v832 = vmax.f32 %v802, 0.0
          %v833 = vmax.f32 %v807, 0.0
          %v834 = vmax.f32 %v810, 0.0
          %v835 = vmax.f32 %v815, 0.0
          %v836 = vmax.f32 %v818, 0.0
          %v837 = vpack.c.bf16 %v822, %v821
          %v838 = vpack.c.bf16 %v824, %v823
          %v839 = vpack.c.bf16 %v826, %v825
          %v840 = vpack.c.bf16 %v828, %v827
          %v841 = vpack.c.bf16 %v830, %v829
          %v842 = vpack.c.bf16 %v832, %v831
          %v843 = vpack.c.bf16 %v834, %v833
          %v844 = vpack.c.bf16 %v836, %v835
          %v853 = vunpack.c.l.b16 %v837
          %v854 = vunpack.c.h.b16 %v837
          %v855 = vunpack.c.l.b16 %v838
          %v856 = vunpack.c.h.b16 %v838
          %v857 = vunpack.c.l.b16 %v839
          %v858 = vunpack.c.h.b16 %v839
          %v859 = vunpack.c.l.b16 %v840
          %v860 = vunpack.c.h.b16 %v840
          %v861 = vunpack.c.l.b16 %v841
          %v862 = vunpack.c.h.b16 %v841
          %v863 = vunpack.c.l.b16 %v842
          %v864 = vunpack.c.h.b16 %v842
          %v865 = vunpack.c.l.b16 %v843
          %v866 = vunpack.c.h.b16 %v843
          %v867 = vunpack.c.l.b16 %v844
          %v868 = vunpack.c.h.b16 %v844
          %v869 = vpack.c.b16 %v853, %v853
          %v870 = vpack.c.b16 %v854, %v854
          %v871 = vpack.c.b16 %v855, %v855
          %v872 = vpack.c.b16 %v856, %v856
          %v873 = vpack.c.b16 %v857, %v857
          %v874 = vpack.c.b16 %v858, %v858
          %v875 = vpack.c.b16 %v859, %v859
          %v876 = vpack.c.b16 %v860, %v860
          %v877 = vpack.c.b16 %v861, %v861
          %v878 = vpack.c.b16 %v862, %v862
          %v879 = vpack.c.b16 %v863, %v863
          %v880 = vpack.c.b16 %v864, %v864
          %v881 = vpack.c.b16 %v865, %v865
          %v882 = vpack.c.b16 %v866, %v866
          %v883 = vpack.c.b16 %v867, %v867
          %v884 = vpack.c.b16 %v868, %v868
          %901 = vst [vmem:[%s248] sm:$0xf] %v869
          %902 = vst [vmem:[%s248 + $0x4] sm:$0xf] %v870
          %903 = vst [vmem:[%s248 + $0x8] sm:$0xf] %v871
          %904 = vst [vmem:[%s248 + $0xc] sm:$0xf] %v872
          %905 = vst [vmem:[%s248 + $0x10] sm:$0xf] %v873
          %906 = vst [vmem:[%s248 + $0x14] sm:$0xf] %v874
          %907 = vst [vmem:[%s248 + $0x18] sm:$0xf] %v875
          %908 = vst [vmem:[%s248 + $0x1c] sm:$0xf] %v876
          %909 = vst [vmem:[%s248 + $0x20] sm:$0xf] %v877
          %910 = vst [vmem:[%s248 + $0x24] sm:$0xf] %v878
          %911 = vst [vmem:[%s248 + $0x28] sm:$0xf] %v879
          %912 = vst [vmem:[%s248 + $0x2c] sm:$0xf] %v880
          %913 = vst [vmem:[%s248 + $0x30] sm:$0xf] %v881
          %914 = vst [vmem:[%s248 + $0x34] sm:$0xf] %v882
          %915 = vst [vmem:[%s248 + $0x38] sm:$0xf] %v883
          %916 = vst [vmem:[%s248 + $0x3c] sm:$0xf] %v884
        $region48: #{tpu_custom_call.1} parent=35 // pred_fallthru
          _
        %s917 = sand.u32 %s137, 1
        %s918 = scalar_lea.sflag [#allocation5], %s917
        %s919 = sand.u32 %s137, 1
        %s920 = smul.addr %s919, 64
        %s921 = scalar_lea.vmem [#allocation6], %s920
        // Predicated region
        $region49: #{tpu_custom_call.1} parent=35 // pred_check
          %p922 = pneg %p147
        $region50: #{tpu_custom_call.1} parent=35 // pred_check_branch
          %924 = sbr.rel (%p922) target = $region52
        $region51: #{tpu_custom_call.1} parent=35 // pred_region
          %s925 = smul.u32 16, %s25
          %s927 = ssub.s32 1024, 1024
          %928 = vsyncadd %s918, %s927
          %s929 = smul.addr %s925, 64
          %s930 = scalar_lea.hbm %s4, %s929
          %s931 = sshll.u32 %s921, 4
          %s932 = int_to_ptr.vmem [resolvable:$true] %s931
          %937 = dma.vmem_to_hbm [thread:$0]  %s932, 1024, %s930, %s918, 64, 64, 4
        $region52: #{tpu_custom_call.1} parent=35 // pred_fallthru
          _
      $region36: #{tpu_custom_call.1} parent=5 // pred_fallthru
        _
      %p938 = scmp.le.s32.totalorder 2, %s16
      // Predicated region
      $region53: #{tpu_custom_call.1} parent=5 // pred_check
        %p939 = pneg %p938
      $region54: #{tpu_custom_call.1} parent=5 // pred_check_branch
        %941 = sbr.rel (%p939) target = $region56
      $region55: #{tpu_custom_call.1} parent=5 // pred_region
        %s942 = ssub.s32 %s16, 2
        // Predicated region
        $region57: #{tpu_custom_call.1} parent=55 // pred_check
          %p943 = pneg %p153
        $region58: #{tpu_custom_call.1} parent=55 // pred_check_branch
          %945 = sbr.rel (%p943) target = $region60
        $region59: #{tpu_custom_call.1} parent=55 // pred_region
          %s946 = sand.u32 %s138, 1
          %s947 = scalar_lea.sflag [#allocation5], %s946
          %s948 = sand.u32 %s138, 1
          %s949 = smul.addr %s948, 64
          %s950 = scalar_lea.vmem [#allocation6], %s949
          %951 = dma.done %s947, 1024
        $region60: #{tpu_custom_call.1} parent=55 // pred_fallthru
          _
      $region56: #{tpu_custom_call.1} parent=5 // pred_fallthru
        _
    $region6: #{tpu_custom_call.1} parent=1 // loop_footer
      %s20 = sadd.s32 1, %s16
    $region7: #{tpu_custom_call.1} parent=1 // loop_footer_branch
      %15 = sbr.rel target = $region3
    $region8: #{tpu_custom_call.1} parent=1 // loop_exit
      _
    %952 = vsyncpa [#allocation4], 1
    %s953 = scalar_lea.sflag [#allocation4], 1
    %954 = vsyncpa %s953, 1
    %955 = vsyncpa [#allocation5], 1
    %s956 = scalar_lea.sflag [#allocation5], 1
    %957 = vsyncpa %s956, 1

</llo_original>
